<compile_context>
chip_gen: v6e
topology: v6e:2x2x1
jax: 0.10.0
libtpu: 0.0.40
codegen_flags: <defaults>
</compile_context>

<pallas_src>
import functools

import jax
import jax.numpy as jnp
from jax.experimental import pallas as pl
from jax.experimental.pallas import tpu as pltpu

N_UNITS = 32            # args.n_units in the original script
_LANE = 128             # TPU lane width; batch is padded to a multiple of this
_MAX_TILE_LANES = 2048  # batch-tile width when the batch is split over a grid


def _tpu_generation():
    """Best-effort TPU generation from device_kind (0 if unknown)."""
    try:
        kind = jax.devices()[0].device_kind.lower()
    except Exception:  # pragma: no cover - CPU / unknown backend fallback
        return 0
    for gen in (7, 6, 5, 4, 3, 2):
        if "v%d" % gen in kind:
            return gen
    return 0


_GEN = _tpu_generation()
_NUM_TC = 2 if _GEN >= 7 else 1          # v7x has 2 TensorCores per chip
_USE_BF16_DEFAULT = _GEN in (6, 7)       # bf16 VPU/EUP only on v6e / v7x


def odefunc_kernel(t_ref, b3_ref, y_ref, w1t_ref, w1y_ref, b1_ref,
                   w2_ref, b2_ref, w3_ref, o_ref, *, use_bf16):
    """MLP forward for one lane-tile of the batch, transposed layout.

    t_ref  : SMEM (1,)        scalar time
    b3_ref : SMEM (1,)        final bias
    y_ref  : VMEM (1, BT)     state values, batch on lanes
    w1t_ref: VMEM (H, 1)      W1[:, 0]  (weight applied to t)
    w1y_ref: VMEM (H, 1)      W1[:, 1]  (weight applied to y)
    b1_ref : VMEM (H, 1)
    w2_ref : VMEM (H, H)      torch layout (out_features, in_features)
    b2_ref : VMEM (H, 1)
    w3_ref : VMEM (H, 1)      torch W3 (1, H) transposed
    o_ref  : VMEM (1, BT)     lane-dense output row
    """
    t = t_ref[0]
    y = y_ref[...]                                                   # (1, BT)

    # Layer 1 pre-activation: (H, BT) via broadcast (no concat / tiny matmul).
    pre1 = t * w1t_ref[...] + w1y_ref[...] * y + b1_ref[...]

    if use_bf16:
        # v6e/v7x: EUP runs bf16 tanh at ~2x the f32 rate, and the MXU is
        # bf16-native (f32 matmuls decompose into multiple bf16 passes).
        h1 = jnp.tanh(pre1.astype(jnp.bfloat16))                     # (H, BT)
        pre2 = jnp.dot(w2_ref[...].astype(jnp.bfloat16), h1,
                       preferred_element_type=jnp.float32) + b2_ref[...]
        h2 = jnp.tanh(pre2.astype(jnp.bfloat16)).astype(jnp.float32)
    else:
        # v5e (no bf16 VPU/EUP) / unknown chips: keep everything f32.
        h1 = jnp.tanh(pre1)
        pre2 = jnp.dot(w2_ref[...], h1,
                       preferred_element_type=jnp.float32) + b2_ref[...]
        h2 = jnp.tanh(pre2)

    # Layer 3: out[b] = sum_f W3[f] * h2[f, b] + b3   -> lane-dense (1, BT)
    o_ref[...] = jnp.sum(w3_ref[...] * h2, axis=0, keepdims=True) + b3_ref[0]


def init_params(key, n_units=N_UNITS, std=0.1):
    """Matches nn.init.normal_(std=0.1) weights / zero biases, torch layout.

    w1: (H, 2), b1: (H,), w2: (H, H), b2: (H,), w3: (1, H), b3: (1,)
    (torch nn.Linear stores weight as (out_features, in_features)).
    """
    k1, k2, k3 = jax.random.split(key, 3)
    w1 = std * jax.random.normal(k1, (n_units, 2), jnp.float32)
    b1 = jnp.zeros((n_units,), jnp.float32)
    w2 = std * jax.random.normal(k2, (n_units, n_units), jnp.float32)
    b2 = jnp.zeros((n_units,), jnp.float32)
    w3 = std * jax.random.normal(k3, (1, n_units), jnp.float32)
    b3 = jnp.zeros((1,), jnp.float32)
    return (w1, b1, w2, b2, w3, b3)


def _batch_tiling(batch, num_tc):
    """Returns (padded_batch, lane_tile, num_grid_tiles).

    Per-tile cost here is dominated by fixed grid-step overhead, not VMEM, so
    tiles are large: a single no-grid invocation covers up to 2048 lanes on
    2-TC chips (4096 on 1-TC chips), and the gridded path uses ~2048-lane
    tiles with the tile count rounded up to a multiple of the TensorCore
    count so "parallel" stays balanced on v7x.
    """
    padded = pl.cdiv(max(batch, 1), _LANE) * _LANE
    single_max = _MAX_TILE_LANES if num_tc > 1 else 2 * _MAX_TILE_LANES
    if padded <= single_max:
        return padded, padded, 1
    num_tiles = pl.cdiv(padded, _MAX_TILE_LANES)
    num_tiles = pl.cdiv(num_tiles, num_tc) * num_tc      # balance TCs (v7x)
    tile = pl.cdiv(pl.cdiv(padded, num_tiles), _LANE) * _LANE
    return tile * num_tiles, tile, num_tiles


def _call_kernel(t_smem, b3_smem, y_row, w1t, w1y, b1c, w2, b2c, w3c,
                 bt, num_tiles, use_bf16):
    h = w2.shape[0]
    bp = y_row.shape[1]
    kernel = functools.partial(odefunc_kernel, use_bf16=use_bf16)
    smem = pl.BlockSpec(memory_space=pltpu.MemorySpace.SMEM)
    vmem = pl.BlockSpec(memory_space=pltpu.MemorySpace.VMEM)
    out_shape = jax.ShapeDtypeStruct((1, bp), jnp.float32)
    args = (t_smem, b3_smem, y_row, w1t, w1y, b1c, w2, b2c, w3c)

    if num_tiles == 1:
        # Single tile: no grid -> no pipelining scaffolding / double buffering.
        return pl.pallas_call(
            kernel,
            out_shape=out_shape,
            in_specs=[smem, smem] + [vmem] * 7,
            out_specs=vmem,
        )(*args)

    # Batch tiled on a "parallel" grid axis; weight blocks keep a constant
    # block index so they stay resident in VMEM across grid steps, and on
    # v7x the even tile count shards cleanly across the two TensorCores.
    const = lambda i: (0, 0)
    return pl.pallas_call(
        kernel,
        out_shape=out_shape,
        grid=(num_tiles,),
        in_specs=[
            smem,                                      # t       (SMEM)
            smem,                                      # b3      (SMEM)
            pl.BlockSpec((1, bt), lambda i: (0, i)),   # y tile
            pl.BlockSpec((h, 1), const),               # W1[:,0]
            pl.BlockSpec((h, 1), const),               # W1[:,1]
            pl.BlockSpec((h, 1), const),               # b1
            pl.BlockSpec((h, h), const),               # W2
            pl.BlockSpec((h, 1), const),               # b2
            pl.BlockSpec((h, 1), const),               # W3^T
        ],
        out_specs=pl.BlockSpec((1, bt), lambda i: (0, i)),
        compiler_params=pltpu.CompilerParams(
            dimension_semantics=("parallel",)),
    )(*args)


def _weight_views(params):
    w1, b1, w2, b2, w3, b3 = params
    h = w1.shape[0]
    return (w1[:, 0:1], w1[:, 1:2], b1.reshape(h, 1), w2,
            b2.reshape(h, 1), w3.reshape(h, 1),
            jnp.asarray(b3, jnp.float32).reshape(1))


@functools.partial(jax.jit, static_argnames=("use_bf16",))
def odefunc_forward_row(t_scalar, y_row, params, use_bf16=_USE_BF16_DEFAULT):
    """Row-layout entry point: y_row is (1, Bp) with Bp a multiple of 128.

    Returns the lane-dense (1, Bp) output row with no pad/slice around the
    kernel (for callers such as a fused solver loop that keep the state in
    this layout).
    """
    w1t, w1y, b1c, w2, b2c, w3c, b3_smem = _weight_views(params)
    bp = y_row.shape[1]
    num_tc = _NUM_TC
    _, bt, num_tiles = _batch_tiling(bp, num_tc)
    t_smem = jnp.asarray(t_scalar, jnp.float32).reshape(1)
    return _call_kernel(t_smem, b3_smem, y_row.astype(jnp.float32),
                        w1t, w1y, b1c, w2, b2c, w3c, bt, num_tiles, use_bf16)


@functools.partial(jax.jit, static_argnames=("use_bf16",))
def odefunc_forward(t_scalar, y, params, use_bf16=_USE_BF16_DEFAULT):
    """Matches ODEFunc.forward(t, y).  y: (B,) or (B, 1)."""
    w1t, w1y, b1c, w2, b2c, w3c, b3_smem = _weight_views(params)
    batch = y.shape[0]
    bp, bt, num_tiles = _batch_tiling(batch, _NUM_TC)

    # Lane-dense layout: batch on the last axis, zero-padded to bp lanes.
    y_row = jnp.pad(
        y.reshape(1, batch).astype(jnp.float32), ((0, 0), (0, bp - batch)))
    t_smem = jnp.asarray(t_scalar, jnp.float32).reshape(1)

    out_row = _call_kernel(t_smem, b3_smem, y_row, w1t, w1y, b1c, w2, b2c, w3c,
                           bt, num_tiles, use_bf16)

    out = out_row[0, :batch].reshape(batch, 1)
    if batch == 1:
        out = out.reshape(())   # torch: result.squeeze() when y.size(0) == 1
    return out


def odefunc_reference(t_scalar, y, params):
    """Pure-JAX reference mirroring the PyTorch forward exactly (f32)."""
    w1, b1, w2, b2, w3, b3 = params
    batch = y.shape[0]
    y2 = y.reshape(batch, 1).astype(jnp.float32)
    t2 = jnp.broadcast_to(
        jnp.asarray(t_scalar, jnp.float32).reshape(1, 1), y2.shape)
    eq = jnp.concatenate([t2, y2], axis=1)                 # (B, 2)
    h1 = jnp.tanh(eq @ w1.T + b1[None, :])
    h2 = jnp.tanh(h1 @ w2.T + b2[None, :])
    out = h2 @ w3.T + b3[None, :]
    if batch == 1:
        out = out.reshape(())
    return out


if __name__ == "__main__":
    key = jax.random.PRNGKey(0)
    kp, ky, kb = jax.random.split(key, 3)

    params = init_params(kp)
    t = jnp.float32(1.5)

    # bf16 is auto-enabled on v6e/v7x (~1e-3 agreement); f32 elsewhere (1e-4).
    if _USE_BF16_DEFAULT:
        atol, rtol = 5e-3, 5e-3
    else:
        atol, rtol = 1e-4, 1e-4

    # Small batch (pads to one 128-lane tile; no-grid path).
    batch = 8
    y = jax.random.normal(ky, (batch,), jnp.float32)
    out = jax.block_until_ready(odefunc_forward(t, y, params))
    ref = odefunc_reference(t, y, params)
    assert out.shape == (batch, 1), out.shape
    assert jnp.allclose(out, ref, atol=atol, rtol=rtol), (
        float(jnp.max(jnp.abs(out - ref))))

    # B == 1 squeeze path (as in the original torch module).
    out1 = jax.block_until_ready(odefunc_forward(t, y[:1], params))
    ref1 = odefunc_reference(t, y[:1], params)
    assert out1.shape == ()
    assert jnp.allclose(out1, ref1, atol=atol, rtol=rtol), (out1, ref1)

    # Larger batch of trajectories: exercises the tiled "parallel" grid path
    # (4600 -> padded past the single-tile threshold on every chip, tile count
    # rounded to a multiple of the TensorCore count).
    batch_big = 4600
    y_big = jax.random.normal(kb, (batch_big,), jnp.float32)
    out_big = jax.block_until_ready(odefunc_forward(t, y_big, params))
    ref_big = odefunc_reference(t, y_big, params)
    assert out_big.shape == (batch_big, 1)
    assert jnp.allclose(out_big, ref_big, atol=atol, rtol=rtol), (
        float(jnp.max(jnp.abs(out_big - ref_big))))

    print("KERNEL_OK")
</pallas_src>

<mosaic_0001>
module attributes {stable_mosaic.version = 11 : i64} {
  func.func @odefunc_kernel(%arg0: memref<1xf32, #tpu.memory_space<smem>>, %arg1: memref<1xf32, #tpu.memory_space<smem>>, %arg2: memref<1x128xf32, #tpu.memory_space<vmem>>, %arg3: memref<32x1xf32, #tpu.memory_space<vmem>>, %arg4: memref<32x1xf32, #tpu.memory_space<vmem>>, %arg5: memref<32x1xf32, #tpu.memory_space<vmem>>, %arg6: memref<32x32xf32, #tpu.memory_space<vmem>>, %arg7: memref<32x1xf32, #tpu.memory_space<vmem>>, %arg8: memref<32x1xf32, #tpu.memory_space<vmem>>, %arg9: memref<1x128xf32, #tpu.memory_space<vmem>>) attributes {dimension_semantics = [], scalar_prefetch = 0 : i64, scratch_operands = 0 : i64, tpu.core_type = #tpu.core_type<tc>} {
    %c0 = arith.constant 0 : index
    %0 = memref.load %arg0[%c0] : memref<1xf32, #tpu.memory_space<smem>>
    %c0_0 = arith.constant 0 : index
    %c0_1 = arith.constant 0 : index
    %1 = vector.load %arg2[%c0_0, %c0_1] : memref<1x128xf32, #tpu.memory_space<vmem>>, vector<1x128xf32>
    %c0_2 = arith.constant 0 : index
    %c0_3 = arith.constant 0 : index
    %2 = vector.load %arg3[%c0_2, %c0_3] : memref<32x1xf32, #tpu.memory_space<vmem>>, vector<32x1xf32>
    %3 = vector.broadcast %0 : f32 to vector<32x1xf32>
    %4 = arith.mulf %3, %2 : vector<32x1xf32>
    %c0_4 = arith.constant 0 : index
    %c0_5 = arith.constant 0 : index
    %5 = vector.load %arg4[%c0_4, %c0_5] : memref<32x1xf32, #tpu.memory_space<vmem>>, vector<32x1xf32>
    %6 = vector.broadcast %5 : vector<32x1xf32> to vector<32x128xf32>
    %7 = vector.broadcast %1 : vector<1x128xf32> to vector<32x128xf32>
    %8 = arith.mulf %6, %7 : vector<32x128xf32>
    %9 = vector.broadcast %4 : vector<32x1xf32> to vector<32x128xf32>
    %10 = arith.addf %9, %8 : vector<32x128xf32>
    %c0_6 = arith.constant 0 : index
    %c0_7 = arith.constant 0 : index
    %11 = vector.load %arg5[%c0_6, %c0_7] : memref<32x1xf32, #tpu.memory_space<vmem>>, vector<32x1xf32>
    %12 = vector.broadcast %11 : vector<32x1xf32> to vector<32x128xf32>
    %13 = arith.addf %10, %12 : vector<32x128xf32>
    %14 = math.tanh %13 : vector<32x128xf32>
    %c0_8 = arith.constant 0 : index
    %c0_9 = arith.constant 0 : index
    %15 = vector.load %arg6[%c0_8, %c0_9] : memref<32x32xf32, #tpu.memory_space<vmem>>, vector<32x32xf32>
    %cst = arith.constant dense<0.000000e+00> : vector<32x128xf32>
    %16 = tpu.matmul %15, %14, %cst {dimension_numbers = #tpu.dot_dimension_numbers<[1], [0], [0], [1], [0, 0, 1, 1], [], []>} : vector<32x32xf32>, vector<32x128xf32>, vector<32x128xf32> -> vector<32x128xf32>
    %c0_10 = arith.constant 0 : index
    %c0_11 = arith.constant 0 : index
    %17 = vector.load %arg7[%c0_10, %c0_11] : memref<32x1xf32, #tpu.memory_space<vmem>>, vector<32x1xf32>
    %18 = vector.broadcast %17 : vector<32x1xf32> to vector<32x128xf32>
    %19 = arith.addf %16, %18 : vector<32x128xf32>
    %20 = math.tanh %19 : vector<32x128xf32>
    %c0_12 = arith.constant 0 : index
    %c0_13 = arith.constant 0 : index
    %21 = vector.load %arg8[%c0_12, %c0_13] : memref<32x1xf32, #tpu.memory_space<vmem>>, vector<32x1xf32>
    %22 = vector.broadcast %21 : vector<32x1xf32> to vector<32x128xf32>
    %23 = arith.mulf %22, %20 : vector<32x128xf32>
    %cst_14 = arith.constant dense<0.000000e+00> : vector<128xf32>
    %24 = vector.multi_reduction <add>, %23, %cst_14 [0] : vector<32x128xf32> to vector<128xf32>
    %25 = vector.shape_cast %24 : vector<128xf32> to vector<1x128xf32>
    %c0_15 = arith.constant 0 : index
    %26 = memref.load %arg1[%c0_15] : memref<1xf32, #tpu.memory_space<smem>>
    %27 = vector.broadcast %26 : f32 to vector<1x128xf32>
    %28 = arith.addf %25, %27 : vector<1x128xf32>
    %c0_16 = arith.constant 0 : index
    %c0_17 = arith.constant 0 : index
    %29 = vector.load %arg9[%c0_16, %c0_17] : memref<1x128xf32, #tpu.memory_space<vmem>>, vector<1x128xf32>
    tpu.vector_store %arg9[%c0_16, %c0_17], %28 {strides = array<i32>} : memref<1x128xf32, #tpu.memory_space<vmem>>, vector<1x128xf32>,
    return
  }
}

</mosaic_0001>

<llo_original>
// kernel: odefunc_forward.1
$region0: #{odefunc_forward.1}
  #allocation0 [shape = 'u32[]', space=smem, size = 0x4, offset = 0x4, fixed_abs, tag = 'smem constant byte address 0x4 - core index']
  #allocation1 [shape = 'u32[144,128]{1,0:T(1,128)}', space=vmem, size = 0x12000, scoped, tag = 'internal scratch']
  #allocation2 [shape = 'f32[1]{0:T(128)S(6)}', space=smem, size = 0x200, scoped, tag = 'scoped memory for odefunc_forward.1']
  #allocation3 [shape = 'f32[1]{0:T(128)S(6)}', space=smem, size = 0x200, scoped, tag = 'scoped memory for odefunc_forward.1']
  %s0 = inlined_call_operand.<no memory space> [shape: f32[1], index: 0, kind: input, shape index: {}]
  %s1 = inlined_call_operand.<no memory space> [shape: f32[1], index: 1, kind: input, shape index: {}]
  %s2 = inlined_call_operand.vmem [shape: f32[1,128], index: 2, kind: input, shape index: {}]
  %s3 = inlined_call_operand.vmem [shape: f32[32,1], index: 3, kind: input, shape index: {}]
  %s4 = inlined_call_operand.vmem [shape: f32[32,1], index: 4, kind: input, shape index: {}]
  %s5 = inlined_call_operand.vmem [shape: f32[32,1], index: 5, kind: input, shape index: {}]
  %s6 = inlined_call_operand.vmem [shape: f32[32,32], index: 6, kind: input, shape index: {}]
  %s7 = inlined_call_operand.vmem [shape: f32[32,1], index: 7, kind: input, shape index: {}]
  %s8 = inlined_call_operand.vmem [shape: f32[32,1], index: 8, kind: input, shape index: {}]
  %s9 = inlined_call_operand.vmem [shape: f32[1,128], index: 9, kind: output, shape index: {}]
  %s10 = sld [smem:[#allocation0]]
  $region46: #{odefunc_forward.1} parent=0
    _
  %s12 = ssub.s32 1, %s10
  %s13 = scalar_select 0, %s12, %s10
  %14 = sst [smem:[#allocation2]] %s0
  %15 = sst [smem:[#allocation3]] %s1
  // Predicated region
  $region2: #{odefunc_forward.1} parent=0 // pred_check
    _
  $region3: #{odefunc_forward.1} parent=0 // pred_check_branch
    %17 = sbr.rel (0) target = $region5
  $region4: #{odefunc_forward.1} parent=0 // pred_region
    _
  $region5: #{odefunc_forward.1} parent=0 // pred_fallthru
    _
  // Predicated region
  $region6: #{odefunc_forward.1} parent=0 // pred_check
    _
  $region7: #{odefunc_forward.1} parent=0 // pred_check_branch
    %19 = sbr.rel (0) target = $region9
  $region8: #{odefunc_forward.1} parent=0 // pred_region
    _
  $region9: #{odefunc_forward.1} parent=0 // pred_fallthru
    _
  // Predicated region
  $region10: #{odefunc_forward.1} parent=0 // pred_check
    _
  $region11: #{odefunc_forward.1} parent=0 // pred_check_branch
    %21 = sbr.rel (0) target = $region13
  $region12: #{odefunc_forward.1} parent=0 // pred_region
    _
  $region13: #{odefunc_forward.1} parent=0 // pred_fallthru
    _
  // Predicated region
  $region14: #{odefunc_forward.1} parent=0 // pred_check
    _
  $region15: #{odefunc_forward.1} parent=0 // pred_check_branch
    %23 = sbr.rel (0) target = $region17
  $region16: #{odefunc_forward.1} parent=0 // pred_region
    _
  $region17: #{odefunc_forward.1} parent=0 // pred_fallthru
    _
  // Predicated region
  $region18: #{odefunc_forward.1} parent=0 // pred_check
    _
  $region19: #{odefunc_forward.1} parent=0 // pred_check_branch
    %25 = sbr.rel (0) target = $region21
  $region20: #{odefunc_forward.1} parent=0 // pred_region
    _
  $region21: #{odefunc_forward.1} parent=0 // pred_fallthru
    _
  // Predicated region
  $region22: #{odefunc_forward.1} parent=0 // pred_check
    _
  $region23: #{odefunc_forward.1} parent=0 // pred_check_branch
    %27 = sbr.rel (0) target = $region25
  $region24: #{odefunc_forward.1} parent=0 // pred_region
    _
  $region25: #{odefunc_forward.1} parent=0 // pred_fallthru
    _
  // Predicated region
  $region26: #{odefunc_forward.1} parent=0 // pred_check
    _
  $region27: #{odefunc_forward.1} parent=0 // pred_check_branch
    %29 = sbr.rel (0) target = $region29
  $region28: #{odefunc_forward.1} parent=0 // pred_region
    _
  $region29: #{odefunc_forward.1} parent=0 // pred_fallthru
    _
  // Predicated region
  $region30: #{odefunc_forward.1} parent=0 // pred_check
    _
  $region31: #{odefunc_forward.1} parent=0 // pred_check_branch
    %31 = sbr.rel (0) target = $region33
  $region32: #{odefunc_forward.1} parent=0 // pred_region
    _
  $region33: #{odefunc_forward.1} parent=0 // pred_fallthru
    _
  // Predicated region
  $region34: #{odefunc_forward.1} parent=0 // pred_check
    _
  $region35: #{odefunc_forward.1} parent=0 // pred_check_branch
    %33 = sbr.rel (0) target = $region37
  $region36: #{odefunc_forward.1} parent=0 // pred_region
    _
  $region37: #{odefunc_forward.1} parent=0 // pred_fallthru
    _
  %s34 = sld [smem:[#allocation2]]
  %v35 = vld [vmem:[%s2] sm:$0x1]
  %v36 = vld [vmem:[%s3] sm:$0xff]
  %v37 = vld [vmem:[%s3 + $0x8] sm:$0xff]
  %v38 = vld [vmem:[%s3 + $0x10] sm:$0xff]
  %v39 = vld [vmem:[%s3 + $0x18] sm:$0xff]
  %v40 = vstv %s34
  %v41 = vmul.f32 %v40, %v36
  %v42 = vmul.f32 %v40, %v37
  %v43 = vmul.f32 %v40, %v38
  %v44 = vmul.f32 %v40, %v39
  %v45 = vld [vmem:[%s4] sm:$0xff]
  %v46 = vld [vmem:[%s4 + $0x8] sm:$0xff]
  %v47 = vld [vmem:[%s4 + $0x10] sm:$0xff]
  %v48 = vld [vmem:[%s4 + $0x18] sm:$0xff]
  %50 = vset.pattern.permute.xlu0 0
  %51 = vperm.xlu0 %50, %v45
  %v52 = vpop.permute.xlu0 %51
  %55 = vset.pattern.permute.xlu0 0
  %56 = vperm.xlu0 %55, %v46
  %v57 = vpop.permute.xlu0 %56
  %60 = vset.pattern.permute.xlu0 0
  %61 = vperm.xlu0 %60, %v47
  %v62 = vpop.permute.xlu0 %61
  %65 = vset.pattern.permute.xlu0 0
  %66 = vperm.xlu0 %65, %v48
  %v67 = vpop.permute.xlu0 %66
  %v70 = vlaneseq
  %v71 = vshrl.u32 %v70, 7
  %v72 = vsub.s32 0, %v71
  %v73 = vrot.slane %v35, %v72
  %v75 = vmul.f32 %v52, %v73
  %v76 = vmul.f32 %v57, %v73
  %v77 = vmul.f32 %v62, %v73
  %v78 = vmul.f32 %v67, %v73
  %80 = vset.pattern.permute.xlu0 0
  %81 = vperm.xlu0 %80, %v41
  %v82 = vpop.permute.xlu0 %81
  %85 = vset.pattern.permute.xlu0 0
  %86 = vperm.xlu0 %85, %v42
  %v87 = vpop.permute.xlu0 %86
  %90 = vset.pattern.permute.xlu0 0
  %91 = vperm.xlu0 %90, %v43
  %v92 = vpop.permute.xlu0 %91
  %95 = vset.pattern.permute.xlu0 0
  %96 = vperm.xlu0 %95, %v44
  %v97 = vpop.permute.xlu0 %96
  %v99 = vadd.f32 %v82, %v75
  %v100 = vadd.f32 %v87, %v76
  %v101 = vadd.f32 %v92, %v77
  %v102 = vadd.f32 %v97, %v78
  %v103 = vld [vmem:[%s5] sm:$0xff]
  %v104 = vld [vmem:[%s5 + $0x8] sm:$0xff]
  %v105 = vld [vmem:[%s5 + $0x10] sm:$0xff]
  %v106 = vld [vmem:[%s5 + $0x18] sm:$0xff]
  %108 = vset.pattern.permute.xlu0 0
  %109 = vperm.xlu0 %108, %v103
  %v110 = vpop.permute.xlu0 %109
  %113 = vset.pattern.permute.xlu0 0
  %114 = vperm.xlu0 %113, %v104
  %v115 = vpop.permute.xlu0 %114
  %118 = vset.pattern.permute.xlu0 0
  %119 = vperm.xlu0 %118, %v105
  %v120 = vpop.permute.xlu0 %119
  %123 = vset.pattern.permute.xlu0 0
  %124 = vperm.xlu0 %123, %v106
  %v125 = vpop.permute.xlu0 %124
  %v127 = vadd.f32 %v99, %v110
  %v128 = vadd.f32 %v100, %v115
  %v129 = vadd.f32 %v101, %v120
  %v130 = vadd.f32 %v102, %v125
  %v131 = vtanh.pop %v127
  %v132 = vtanh.pop %v128
  %v133 = vtanh.pop %v129
  %v134 = vtanh.pop %v130
  %v135 = vld [vmem:[%s6] sm:$0xff]
  %v136 = vld [vmem:[%s6 + $0x8] sm:$0xff]
  %v137 = vld [vmem:[%s6 + $0x10] sm:$0xff]
  %v138 = vld [vmem:[%s6 + $0x18] sm:$0xff]
  %v139 = vld [vmem:[%s7] sm:$0xff]
  %v140 = vld [vmem:[%s7 + $0x8] sm:$0xff]
  %v141 = vld [vmem:[%s7 + $0x10] sm:$0xff]
  %v142 = vld [vmem:[%s7 + $0x18] sm:$0xff]
  %144 = vset.pattern.permute.xlu0 0
  %145 = vperm.xlu0 %144, %v139
  %v146 = vpop.permute.xlu0 %145
  %149 = vset.pattern.permute.xlu0 0
  %150 = vperm.xlu0 %149, %v140
  %v151 = vpop.permute.xlu0 %150
  %154 = vset.pattern.permute.xlu0 0
  %155 = vperm.xlu0 %154, %v141
  %v156 = vpop.permute.xlu0 %155
  %159 = vset.pattern.permute.xlu0 0
  %160 = vperm.xlu0 %159, %v142
  %v161 = vpop.permute.xlu0 %160
  %vm163 = vcmask 261120
  %v165 = vsel %vm163, %v135, 0
  %v168 = vsel %vm163, %v136, 0
  %v171 = vsel %vm163, %v137, 0
  %v174 = vsel %vm163, %v138, 0
  %176 = vmatprep.subr.mxu0 0.0
  %177 = vmatpush1.msra.mxu0 0.0
  %178 = vmatprep.subr.mxu0 0.0
  %179 = vmatpush1.msra.mxu0 0.0
  %180 = vmatprep.subr.mxu0 0.0
  %181 = vmatpush1.msra.mxu0 0.0
  %182 = vmatprep.subr.mxu0 0.0
  %183 = vmatpush1.msra.mxu0 0.0
  %184 = vmatprep.subr.mxu0 0.0
  %185 = vmatpush1.msra.mxu0 0.0
  %186 = vmatprep.subr.mxu0 0.0
  %187 = vmatpush1.msra.mxu0 0.0
  %188 = vmatprep.subr.mxu0 0.0
  %189 = vmatpush1.msra.mxu0 0.0
  %190 = vmatprep.subr.mxu0 0.0
  %191 = vmatpush1.msra.mxu0 0.0
  %192 = vmatprep.subr.mxu0 0.0
  %193 = vmatpush1.msra.mxu0 0.0
  %194 = vmatprep.subr.mxu0 0.0
  %195 = vmatpush1.msra.mxu0 0.0
  %196 = vmatprep.subr.mxu0 0.0
  %197 = vmatpush1.msra.mxu0 0.0
  %198 = vmatprep.subr.mxu0 0.0
  %199 = vmatpush1.msra.mxu0 0.0
  %200 = vmatprep.subr.mxu0 0.0
  %201 = vmatpush1.msra.mxu0 %v134
  %202 = vmatprep.subr.mxu0 0.0
  %203 = vmatpush1.msra.mxu0 %v133
  %204 = vmatprep.subr.mxu0 0.0
  %205 = vmatpush1.msra.mxu0 %v132
  %206 = vmatprep.subr.mxu0 0.0
  %207 = vmatpush1.msra.mxu0 %v131
  %208 = vmatprep.subr.mxu0 0.0
  %209 = vmatpush2.msra.mxu0 0.0
  %210 = vmatprep.subr.mxu0 0.0
  %211 = vmatpush2.msra.mxu0 0.0
  %212 = vmatprep.subr.mxu0 0.0
  %213 = vmatpush2.msra.mxu0 0.0
  %214 = vmatprep.subr.mxu0 0.0
  %215 = vmatpush2.msra.mxu0 0.0
  %216 = vmatprep.subr.mxu0 0.0
  %217 = vmatpush2.msra.mxu0 0.0
  %218 = vmatprep.subr.mxu0 0.0
  %219 = vmatpush2.msra.mxu0 0.0
  %220 = vmatprep.subr.mxu0 0.0
  %221 = vmatpush2.msra.mxu0 0.0
  %222 = vmatprep.subr.mxu0 0.0
  %223 = vmatpush2.msra.mxu0 0.0
  %224 = vmatprep.subr.mxu0 0.0
  %225 = vmatpush2.msra.mxu0 0.0
  %226 = vmatprep.subr.mxu0 0.0
  %227 = vmatpush2.msra.mxu0 0.0
  %228 = vmatprep.subr.mxu0 0.0
  %229 = vmatpush2.msra.mxu0 0.0
  %230 = vmatprep.subr.mxu0 0.0
  %231 = vmatpush2.msra.mxu0 0.0
  %232 = vmatprep.subr.mxu0 0.0
  %233 = vmatpush2.msra.mxu0 0.0
  %234 = vmatprep.subr.mxu0 0.0
  %235 = vmatpush2.msra.mxu0 0.0
  %236 = vmatprep.subr.mxu0 0.0
  %237 = vmatpush2.msra.mxu0 0.0
  %238 = vmatprep.subr.mxu0 0.0
  %239 = vmatpush2.msra.mxu0 0.0
  %240 = vmatprep.mubr.f32.mxu0 0.0
  %241 = vmatmul.mubr.f32.gmra.mxu0 %v165
  %v242 = vpop.f32.mrf.mxu0
  %v243 = vadd.f32 %v146, %v242
  %v244 = vpop.f32.mrf.mxu0
  %245 = vmatprep.mubr.f32.mxu0 0.0
  %246 = vmatmul.mubr.f32.gmra.mxu0 %v168
  %v247 = vpop.f32.mrf.mxu0
  %v248 = vadd.f32 %v151, %v247
  %v249 = vpop.f32.mrf.mxu0
  %250 = vmatprep.mubr.f32.mxu0 0.0
  %251 = vmatmul.mubr.f32.gmra.mxu0 %v171
  %v252 = vpop.f32.mrf.mxu0
  %v253 = vadd.f32 %v156, %v252
  %v254 = vpop.f32.mrf.mxu0
  %255 = vmatprep.mubr.f32.mxu0 0.0
  %256 = vmatmul.mubr.f32.gmra.mxu0 %v174
  %v257 = vpop.f32.mrf.mxu0
  %v258 = vadd.f32 %v161, %v257
  %v259 = vpop.f32.mrf.mxu0
  %260 = vdwg.mxu0
  %v261 = vtanh.pop %v243
  %v262 = vtanh.pop %v248
  %v263 = vtanh.pop %v253
  %v264 = vtanh.pop %v258
  %v265 = vld [vmem:[%s8] sm:$0xff]
  %v266 = vld [vmem:[%s8 + $0x8] sm:$0xff]
  %v267 = vld [vmem:[%s8 + $0x10] sm:$0xff]
  %v268 = vld [vmem:[%s8 + $0x18] sm:$0xff]
  %270 = vset.pattern.permute.xlu0 0
  %271 = vperm.xlu0 %270, %v265
  %v272 = vpop.permute.xlu0 %271
  %275 = vset.pattern.permute.xlu0 0
  %276 = vperm.xlu0 %275, %v266
  %v277 = vpop.permute.xlu0 %276
  %280 = vset.pattern.permute.xlu0 0
  %281 = vperm.xlu0 %280, %v267
  %v282 = vpop.permute.xlu0 %281
  %285 = vset.pattern.permute.xlu0 0
  %286 = vperm.xlu0 %285, %v268
  %v287 = vpop.permute.xlu0 %286
  %v289 = vmul.f32 %v272, %v261
  %v290 = vmul.f32 %v277, %v262
  %v291 = vmul.f32 %v282, %v263
  %v292 = vmul.f32 %v287, %v264
  %v293 = vadd.f32 %v289, %v290
  %v294 = vadd.f32 %v293, %v291
  %v295 = vadd.f32 %v294, %v292
  %v296 = vrot.slane %v295, 4
  %v297 = vadd.f32 %v295, %v296
  %v298 = vrot.slane %v297, 2
  %v299 = vadd.f32 %v297, %v298
  %v300 = vrot.slane %v299, 1
  %v301 = vadd.f32 %v299, %v300
  %s302 = sld [smem:[#allocation3]]
  %v303 = vstv %s302
  %v304 = vadd.f32 %v301, %v303
  %305 = vst [vmem:[%s9] sm:$0x1] %v304
  // Predicated region
  $region38: #{odefunc_forward.1} parent=0 // pred_check
    _
  $region39: #{odefunc_forward.1} parent=0 // pred_check_branch
    %307 = sbr.rel (0) target = $region41
  $region40: #{odefunc_forward.1} parent=0 // pred_region
    _
  $region41: #{odefunc_forward.1} parent=0 // pred_fallthru
    _
  // Predicated region
  $region42: #{odefunc_forward.1} parent=0 // pred_check
    _
  $region43: #{odefunc_forward.1} parent=0 // pred_check_branch
    %309 = sbr.rel (0) target = $region45
  $region44: #{odefunc_forward.1} parent=0 // pred_region
    _
  $region45: #{odefunc_forward.1} parent=0 // pred_fallthru
    _

</llo_original>
